<compile_context>
chip_gen: v5e
topology: v5e:2x2
jax: 0.10.0
libtpu: 0.0.40
codegen_flags: <defaults>
</compile_context>

<pallas_src>
import functools

import jax
import jax.numpy as jnp
from jax.experimental import pallas as pl
from jax.experimental.pallas import tpu as pltpu

LANE = 128
# Max bytes for a VMEM-resident panel (double-buffered by the pipeline -> 2x this).
_RESIDENT_BYTES_MAX = 4 * 1024 * 1024


def _round_up(x, m):
    return ((x + m - 1) // m) * m


def _choose_tiling(n):
    """Return (n_p, tm, tk): padded N and Â tile sizes.

    Big tiles (HBM-BW bound kernel) but >= 2 row tiles when n_p >= 256 so the v7x
    megacore can shard the 'parallel' row axis across both TensorCores.
    """
    if n <= 128:
        return 128, 128, 128
    if n <= 256:
        return 256, 128, 256
    if n <= 512:
        return 512, 256, 512
    if n <= 1024:
        return 1024, 512, 1024
    return _round_up(n, 1024), 512, 1024


def _gcn_agg_kernel(*refs, tk, resident, apply_relu, fused_w2):
    """One grid step of  acc += Â_tile @ panel_k ; epilogue = (+bias, relu?, @W2?).

    Grid = (row_tiles, k_tiles); k (axis 1) is the reduction axis.
    """
    if fused_w2:
        a_ref, p_ref, b_ref, w2_ref, o_ref, acc_ref = refs
    else:
        a_ref, p_ref, b_ref, o_ref, acc_ref = refs
        w2_ref = None

    k = pl.program_id(1)

    @pl.when(k == 0)
    def _():
        acc_ref[...] = jnp.zeros_like(acc_ref)

    if resident:
        # Panel is the full VMEM-resident array; slice this step's k-panel in-kernel.
        start = pl.multiple_of(k * tk, tk)
        panel = p_ref[pl.ds(start, tk), :]
    else:
        panel = p_ref[...]

    # Dominant matmul: (tm, tk) bf16 @ (tk, F) bf16 -> f32 accumulation on the MXU.
    acc_ref[...] += jnp.dot(a_ref[...], panel, preferred_element_type=jnp.float32)

    @pl.when(k == pl.num_programs(1) - 1)
    def _():
        y = acc_ref[...] + b_ref[...]          # f32 bias add on full-lane vregs
        if apply_relu:
            y = jnp.maximum(y, 0.0)            # f32 ReLU epilogue (v5e-safe)
        if fused_w2:
            # Fused second projection: (tm, F) bf16 @ (F, Fout) bf16 -> f32, once/row-tile.
            y = jnp.dot(y.astype(jnp.bfloat16), w2_ref[...],
                        preferred_element_type=jnp.float32)
        o_ref[...] = y.astype(o_ref.dtype)


def _gcn_agg_layer(a_p, panel, bias, w2=None, *, apply_relu, out_dtype, tm, tk, resident):
    """Tiled pallas_call for  Â @ panel + bias  (optional ReLU and fused @W2 epilogue)."""
    n_p = a_p.shape[0]
    fp = panel.shape[1]                       # panel / accumulator lane width
    fused_w2 = w2 is not None
    fout = w2.shape[1] if fused_w2 else fp    # output lane width
    grid = (n_p // tm, n_p // tk)

    if resident:
        panel_spec = pl.BlockSpec((n_p, fp), lambda i, k: (0, 0))   # fetched once, resident
    else:
        panel_spec = pl.BlockSpec((tk, fp), lambda i, k: (k, 0))    # streamed k-panel

    in_specs = [
        pl.BlockSpec((tm, tk), lambda i, k: (i, k)),    # Â tile (bf16, double-buffered)
        panel_spec,                                      # XW1 / G panel (bf16)
        pl.BlockSpec((1, fp), lambda i, k: (0, 0)),      # bias (f32, resident)
    ]
    args = [a_p, panel, bias]
    if fused_w2:
        in_specs.append(pl.BlockSpec((fp, fout), lambda i, k: (0, 0)))  # W2 (bf16, resident)
        args.append(w2)

    out_itemsize = 2 if out_dtype == jnp.bfloat16 else 4
    flops = 2 * n_p * n_p * fp + (2 * n_p * fp * fout if fused_w2 else 0)
    bytes_accessed = (a_p.size * a_p.dtype.itemsize
                      + panel.size * panel.dtype.itemsize * (1 if resident else grid[0])
                      + bias.size * bias.dtype.itemsize
                      + (w2.size * w2.dtype.itemsize if fused_w2 else 0)
                      + n_p * fout * out_itemsize)

    return pl.pallas_call(
        functools.partial(_gcn_agg_kernel, tk=tk, resident=resident,
                          apply_relu=apply_relu, fused_w2=fused_w2),
        out_shape=jax.ShapeDtypeStruct((n_p, fout), out_dtype),
        grid_spec=pltpu.PrefetchScalarGridSpec(
            num_scalar_prefetch=0,
            grid=grid,
            in_specs=in_specs,
            out_specs=pl.BlockSpec((tm, fout), lambda i, k: (i, 0)),
            scratch_shapes=[pltpu.VMEM((tm, fp), jnp.float32)],   # f32 accumulator
        ),
        compiler_params=pltpu.CompilerParams(
            dimension_semantics=("parallel", "arbitrary"),
        ),
        cost_estimate=pl.CostEstimate(flops=int(flops), transcendentals=0,
                                      bytes_accessed=int(bytes_accessed)),
    )(*args)


def gcn_encoder(a_hat, x, params, force_streamed=False):
    """GCNEncoder forward: relu(GCNConv) -> fused {GCNConv mu | GCNConv log_var}."""
    n, _ = x.shape
    hidden = params["w1"].shape[1]
    latent = params["w_mu"].shape[1]

    n_p, tm, tk = _choose_tiling(n)
    hid_p = _round_up(hidden, LANE)
    lat2_p = _round_up(2 * latent, LANE)

    bf16 = jnp.bfloat16

    # Zero-padded bf16 Â; padded rows/cols contribute nothing to real output rows.
    a_p = jnp.zeros((n_p, n_p), bf16).at[:n, :n].set(a_hat.astype(bf16))

    # Hoisted small matmul: XW1 computed once in f32, then cast to bf16 and lane-padded.
    xw1 = x @ params["w1"]                                        # (n, hidden) f32
    xw1_p = jnp.zeros((n_p, hid_p), bf16).at[:n, :hidden].set(xw1.astype(bf16))
    b1_p = jnp.zeros((1, hid_p), jnp.float32).at[:, :hidden].set(params["b1"])

    # Fused mu|log_var weights / biases, lane-padded to 128.
    w_cat = jnp.concatenate([params["w_mu"], params["w_var"]], axis=1)
    b_cat = jnp.concatenate([params["b_mu"], params["b_var"]], axis=1)
    wcat_p = jnp.zeros((hid_p, lat2_p), bf16).at[:hidden, :2 * latent].set(w_cat.astype(bf16))
    bcat_p = jnp.zeros((1, lat2_p), jnp.float32).at[:, :2 * latent].set(b_cat)

    resident1 = (not force_streamed) and (n_p * hid_p * 2 <= _RESIDENT_BYTES_MAX)
    resident2 = (not force_streamed) and (n_p * lat2_p * 2 <= _RESIDENT_BYTES_MAX)

    # Stage 1 (fused epilogue): G = relu(Â @ XW1 + b1) @ [Wmu|Wvar], bf16 output.
    # (Padded rows of G are nonzero, but Â's real rows have zeros in padded columns,
    #  so they never reach real outputs.)
    g_p = _gcn_agg_layer(a_p, xw1_p, b1_p, wcat_p, apply_relu=True,
                         out_dtype=bf16, tm=tm, tk=tk, resident=resident1)

    # Stage 2: Ycat = Â @ G + [bmu|bvar]  -> pure streaming matmul, f32 output.
    y_cat = _gcn_agg_layer(a_p, g_p, bcat_p, None, apply_relu=False,
                           out_dtype=jnp.float32, tm=tm, tk=tk, resident=resident2)

    mu = y_cat[:n, :latent]
    log_var = y_cat[:n, latent:2 * latent]
    return mu, log_var


def normalized_adjacency(edge_index, num_nodes):
    """Dense D^{-1/2} (A + I) D^{-1/2}, matching GCNConv's gcn_norm."""
    src, dst = edge_index[0], edge_index[1]
    a = jnp.zeros((num_nodes, num_nodes), jnp.float32)
    a = a.at[dst, src].add(1.0)
    a = a + jnp.eye(num_nodes, dtype=jnp.float32)
    deg = a.sum(axis=1)
    d_inv_sqrt = jnp.where(deg > 0, jax.lax.rsqrt(deg), 0.0)
    return d_inv_sqrt[:, None] * a * d_inv_sqrt[None, :]


def init_params(key, in_channels, hidden_channels, latent_channels):
    k1, k2, k3 = jax.random.split(key, 3)

    def glorot(k, fan_in, fan_out):
        scale = jnp.sqrt(6.0 / (fan_in + fan_out))
        return jax.random.uniform(k, (fan_in, fan_out), jnp.float32, -scale, scale)

    return {
        "w1": glorot(k1, in_channels, hidden_channels),
        "b1": jnp.zeros((1, hidden_channels), jnp.float32),
        "w_mu": glorot(k2, hidden_channels, latent_channels),
        "b_mu": jnp.zeros((1, latent_channels), jnp.float32),
        "w_var": glorot(k3, hidden_channels, latent_channels),
        "b_var": jnp.zeros((1, latent_channels), jnp.float32),
    }


def gcn_encoder_ref(a_hat, x, params):
    """Pure-JAX f32 reference for correctness checking."""
    h = jnp.maximum(a_hat @ (x @ params["w1"]) + params["b1"], 0.0)
    mu = a_hat @ (h @ params["w_mu"]) + params["b_mu"]
    log_var = a_hat @ (h @ params["w_var"]) + params["b_var"]
    return mu, log_var


if __name__ == "__main__":
    num_nodes = 16
    in_channels = 8
    hidden_channels = 32
    latent_channels = 16

    key = jax.random.PRNGKey(0)
    k_x, k_p = jax.random.split(key)

    # Node features
    x = jax.random.normal(k_x, (num_nodes, in_channels), jnp.float32)

    # Deterministic ring graph (undirected: both directions)
    idx = jnp.arange(num_nodes)
    nxt = (idx + 1) % num_nodes
    edge_index = jnp.stack([jnp.concatenate([idx, nxt]),
                            jnp.concatenate([nxt, idx])], axis=0)  # (2, 2N)

    a_hat = normalized_adjacency(edge_index, num_nodes)
    params = init_params(k_p, in_channels, hidden_channels, latent_channels)

    mu_ref, log_var_ref = gcn_encoder_ref(a_hat, x, params)

    # Resident-panel path (the common case for small/medium graphs).
    mu, log_var = gcn_encoder(a_hat, x, params)
    jax.block_until_ready((mu, log_var))
    assert mu.shape == (num_nodes, latent_channels)
    assert log_var.shape == (num_nodes, latent_channels)
    # Kernel uses bf16 MXU operands with f32 accumulation -> compare at bf16 tolerance.
    assert jnp.allclose(mu, mu_ref, atol=5e-2, rtol=5e-2)
    assert jnp.allclose(log_var, log_var_ref, atol=5e-2, rtol=5e-2)

    # Streamed-panel fallback path (used for very large graphs) — exercise it too.
    mu_s, log_var_s = gcn_encoder(a_hat, x, params, force_streamed=True)
    jax.block_until_ready((mu_s, log_var_s))
    assert jnp.allclose(mu_s, mu_ref, atol=5e-2, rtol=5e-2)
    assert jnp.allclose(log_var_s, log_var_ref, atol=5e-2, rtol=5e-2)

    print("KERNEL_OK")
</pallas_src>

<mosaic_0001>
module attributes {stable_mosaic.version = 11 : i64} {
  func.func @_gcn_agg_kernel(%arg0: i32, %arg1: i32, %arg2: memref<128x128xbf16, #tpu.memory_space<vmem>>, %arg3: memref<128x128xbf16, #tpu.memory_space<vmem>>, %arg4: memref<1x128xf32, #tpu.memory_space<vmem>>, %arg5: memref<128x128xbf16, #tpu.memory_space<vmem>>, %arg6: memref<128x128xbf16, #tpu.memory_space<vmem>>, %arg7: memref<128x128xf32, #tpu.memory_space<vmem>>) attributes {dimension_semantics = [#tpu.dimension_semantics<parallel>, #tpu.dimension_semantics<arbitrary>], iteration_bounds = array<i64: 1, 1>, scalar_prefetch = 0 : i64, scratch_operands = 1 : i64, tpu.core_type = #tpu.core_type<tc>, window_params = [{transform_indices = @transform_0, window_bounds = array<i64: 128, 128>}, {pipeline_mode = #tpu.pipeline_mode<synchronous>, transform_indices = @transform_1, window_bounds = array<i64: 128, 128>}, {pipeline_mode = #tpu.pipeline_mode<synchronous>, transform_indices = @transform_2, window_bounds = array<i64: 1, 128>}, {pipeline_mode = #tpu.pipeline_mode<synchronous>, transform_indices = @transform_3, window_bounds = array<i64: 128, 128>}, {transform_indices = @transform_4, window_bounds = array<i64: 128, 128>}]} {
    %c0_i32 = arith.constant 0 : i32
    %0 = arith.cmpi eq, %arg1, %c0_i32 : i32
    %1 = arith.extui %0 : i1 to i32
    %c0_i32_0 = arith.constant 0 : i32
    %2 = arith.cmpi ne, %1, %c0_i32_0 : i32
    scf.if %2 {
      %cst_9 = arith.constant 0.000000e+00 : f32
      %15 = vector.broadcast %cst_9 : f32 to vector<128x128xf32>
      %c0_10 = arith.constant 0 : index
      %c0_11 = arith.constant 0 : index
      %16 = vector.load %arg7[%c0_10, %c0_11] : memref<128x128xf32, #tpu.memory_space<vmem>>, vector<128x128xf32>
      tpu.vector_store %arg7[%c0_10, %c0_11], %15 {strides = array<i32>} : memref<128x128xf32, #tpu.memory_space<vmem>>, vector<128x128xf32>,
    } else {
    }
    %c128_i32 = arith.constant 128 : i32
    %3 = arith.muli %arg1, %c128_i32 : i32
    %4 = tpu.assume_multiple %3, 128 : i32
    %5 = arith.index_cast %4 : i32 to index
    %c0 = arith.constant 0 : index
    %6 = vector.load %arg3[%5, %c0] : memref<128x128xbf16, #tpu.memory_space<vmem>>, vector<128x128xbf16>
    %c0_1 = arith.constant 0 : index
    %c0_2 = arith.constant 0 : index
    %7 = vector.load %arg7[%c0_1, %c0_2] : memref<128x128xf32, #tpu.memory_space<vmem>>, vector<128x128xf32>
    %c0_3 = arith.constant 0 : index
    %c0_4 = arith.constant 0 : index
    %8 = vector.load %arg2[%c0_3, %c0_4] : memref<128x128xbf16, #tpu.memory_space<vmem>>, vector<128x128xbf16>
    %cst = arith.constant dense<0.000000e+00> : vector<128x128xf32>
    %9 = tpu.matmul %8, %6, %cst {dimension_numbers = #tpu.dot_dimension_numbers<[1], [0], [0], [1], [0, 0, 1, 1], [], []>} : vector<128x128xbf16>, vector<128x128xbf16>, vector<128x128xf32> -> vector<128x128xf32>
    %10 = arith.addf %7, %9 : vector<128x128xf32>
    %c0_5 = arith.constant 0 : index
    %c0_6 = arith.constant 0 : index
    %11 = vector.load %arg7[%c0_5, %c0_6] : memref<128x128xf32, #tpu.memory_space<vmem>>, vector<128x128xf32>
    tpu.vector_store %arg7[%c0_5, %c0_6], %10 {strides = array<i32>} : memref<128x128xf32, #tpu.memory_space<vmem>>, vector<128x128xf32>,
    %c0_i32_7 = arith.constant 0 : i32
    %12 = arith.cmpi eq, %arg1, %c0_i32_7 : i32
    %13 = arith.extui %12 : i1 to i32
    %c0_i32_8 = arith.constant 0 : i32
    %14 = arith.cmpi ne, %13, %c0_i32_8 : i32
    scf.if %14 {
      %c0_9 = arith.constant 0 : index
      %c0_10 = arith.constant 0 : index
      %15 = vector.load %arg7[%c0_9, %c0_10] : memref<128x128xf32, #tpu.memory_space<vmem>>, vector<128x128xf32>
      %c0_11 = arith.constant 0 : index
      %c0_12 = arith.constant 0 : index
      %16 = vector.load %arg4[%c0_11, %c0_12] : memref<1x128xf32, #tpu.memory_space<vmem>>, vector<1x128xf32>
      %17 = vector.broadcast %16 : vector<1x128xf32> to vector<128x128xf32>
      %18 = arith.addf %15, %17 : vector<128x128xf32>
      %cst_13 = arith.constant 0.000000e+00 : f32
      %19 = vector.broadcast %cst_13 : f32 to vector<128x128xf32>
      %20 = arith.maximumf %18, %19 : vector<128x128xf32>
      %21 = arith.truncf %20 : vector<128x128xf32> to vector<128x128xbf16>
      %c0_14 = arith.constant 0 : index
      %c0_15 = arith.constant 0 : index
      %22 = vector.load %arg5[%c0_14, %c0_15] : memref<128x128xbf16, #tpu.memory_space<vmem>>, vector<128x128xbf16>
      %cst_16 = arith.constant dense<0.000000e+00> : vector<128x128xf32>
      %23 = tpu.matmul %21, %22, %cst_16 {dimension_numbers = #tpu.dot_dimension_numbers<[1], [0], [0], [1], [0, 0, 1, 1], [], []>} : vector<128x128xbf16>, vector<128x128xbf16>, vector<128x128xf32> -> vector<128x128xf32>
      %24 = arith.truncf %23 : vector<128x128xf32> to vector<128x128xbf16>
      %c0_17 = arith.constant 0 : index
      %c0_18 = arith.constant 0 : index
      %25 = vector.load %arg6[%c0_17, %c0_18] : memref<128x128xbf16, #tpu.memory_space<vmem>>, vector<128x128xbf16>
      tpu.vector_store %arg6[%c0_17, %c0_18], %24 {strides = array<i32>} : memref<128x128xbf16, #tpu.memory_space<vmem>>, vector<128x128xbf16>,
    } else {
    }
    return
  }
  func.func @transform_0(%arg0: i32, %arg1: i32) -> (i32, i32) {
    %c0_i32 = arith.constant 0 : i32
    return %arg0, %arg1 : i32, i32
  }
  func.func @transform_1(%arg0: i32, %arg1: i32) -> (i32, i32) {
    %c0_i32 = arith.constant 0 : i32
    %c0_i32_0 = arith.constant 0 : i32
    %c0_i32_1 = arith.constant 0 : i32
    return %c0_i32, %c0_i32_0 : i32, i32
  }
  func.func @transform_2(%arg0: i32, %arg1: i32) -> (i32, i32) {
    %c0_i32 = arith.constant 0 : i32
    %c0_i32_0 = arith.constant 0 : i32
    %c0_i32_1 = arith.constant 0 : i32
    return %c0_i32, %c0_i32_0 : i32, i32
  }
  func.func @transform_3(%arg0: i32, %arg1: i32) -> (i32, i32) {
    %c0_i32 = arith.constant 0 : i32
    %c0_i32_0 = arith.constant 0 : i32
    %c0_i32_1 = arith.constant 0 : i32
    return %c0_i32, %c0_i32_0 : i32, i32
  }
  func.func @transform_4(%arg0: i32, %arg1: i32) -> (i32, i32) {
    %c0_i32 = arith.constant 0 : i32
    %c0_i32_0 = arith.constant 0 : i32
    return %arg0, %c0_i32 : i32, i32
  }
}

</mosaic_0001>

<llo_original>
// kernel: tpu_custom_call.1
$region0: #{tpu_custom_call.1}
  #allocation0 [shape = 'u32[]', space=smem, size = 0x4, offset = 0x4, fixed_abs, tag = 'smem constant byte address 0x4 - core index']
  #allocation1 [shape = 'u32[72,128]{1,0:T(1,128)}', space=vmem, size = 0x9000, scoped, tag = 'internal scratch']
  #allocation2 [shape = 'f32[128,128]{1,0:T(8,128)}', space=vmem, size = 0x10000, scoped, tag = 'scratch operand']
  %s0 = inlined_call_operand.hbm [shape: bf16[128,128], index: 0, kind: input, shape index: {}]
  %s1 = inlined_call_operand.hbm [shape: bf16[128,128], index: 1, kind: input, shape index: {}]
  %s2 = inlined_call_operand.vmem [shape: f32[1,128], index: 2, kind: input, shape index: {}]
  %s3 = inlined_call_operand.hbm [shape: bf16[128,128], index: 3, kind: input, shape index: {}]
  %s4 = inlined_call_operand.hbm [shape: bf16[128,128], index: 4, kind: output, shape index: {}]
  %s5 = sld [smem:[#allocation0]]
  $region46: #{tpu_custom_call.1} parent=0
    _
  %s7 = ssub.s32 1, %s5
  %s8 = scalar_select 0, %s7, %s5
  $region1: #{tpu_custom_call.1} parent=0
    #allocation3 [shape = 'u8[32768]{0}', space=vmem, size = 0x8000, scoped, tag = 'input window, operand 0, single buffered']
    #allocation4 [shape = 's32[1]{0}', space=sflag, size = 0x4, scoped, tag = 'scoped memory for tpu_custom_call.1']
    #allocation5 [shape = 's32[1]{0}', space=sflag, size = 0x4, scoped, tag = 'scoped memory for tpu_custom_call.1']
    #allocation6 [shape = 'u8[32768]{0}', space=vmem, size = 0x8000, scoped, tag = 'input window, operand 1, single buffered']
    #allocation7 [shape = 's32[1]{0}', space=sflag, size = 0x4, scoped, tag = 'scoped memory for tpu_custom_call.1']
    #allocation8 [shape = 'u8[32768]{0}', space=vmem, size = 0x8000, scoped, tag = 'input window, operand 3, single buffered']
    #allocation9 [shape = 'u8[32768]{0}', space=vmem, size = 0x8000, scoped, tag = 'output window, operand 0, single buffered']
    %9 = vsyncpa [#allocation4], 0
    %10 = vsyncpa [#allocation7], 0
    %11 = vsyncpa [#allocation5], 0
    // Predicated region
    $region2: #{tpu_custom_call.1} parent=1 // pred_check
      _
    $region3: #{tpu_custom_call.1} parent=1 // pred_check_branch
      %13 = sbr.rel (0) target = $region5
    $region4: #{tpu_custom_call.1} parent=1 // pred_region
      %15 = vsyncadd [#allocation4], 0
      %s16 = sshll.u32 %s0, 4
      %s17 = int_to_ptr.hbm [resolvable:$true] %s16
      %s18 = sshll.u32 [#allocation3], 4
      %s19 = int_to_ptr.vmem [resolvable:$true] %s18
      %24 = dma.hbm_to_vmem [thread:$0]  %s17, 1024, %s19, [#allocation4], 64, 64, 4
    $region5: #{tpu_custom_call.1} parent=1 // pred_fallthru
      _
    // Predicated region
    $region6: #{tpu_custom_call.1} parent=1 // pred_check
      _
    $region7: #{tpu_custom_call.1} parent=1 // pred_check_branch
      %26 = sbr.rel (0) target = $region9
    $region8: #{tpu_custom_call.1} parent=1 // pred_region
      %28 = vsyncadd [#allocation7], 0
      %s29 = sshll.u32 %s1, 4
      %s30 = int_to_ptr.hbm [resolvable:$true] %s29
      %s31 = sshll.u32 [#allocation6], 4
      %s32 = int_to_ptr.vmem [resolvable:$true] %s31
      %37 = dma.hbm_to_vmem [thread:$0]  %s30, 1024, %s32, [#allocation7], 64, 64, 4
    $region9: #{tpu_custom_call.1} parent=1 // pred_fallthru
      _
    // Predicated region
    $region10: #{tpu_custom_call.1} parent=1 // pred_check
      _
    $region11: #{tpu_custom_call.1} parent=1 // pred_check_branch
      %39 = sbr.rel (0) target = $region13
    $region12: #{tpu_custom_call.1} parent=1 // pred_region
      _
    $region13: #{tpu_custom_call.1} parent=1 // pred_fallthru
      _
    // Predicated region
    $region14: #{tpu_custom_call.1} parent=1 // pred_check
      _
    $region15: #{tpu_custom_call.1} parent=1 // pred_check_branch
      %41 = sbr.rel (0) target = $region17
    $region16: #{tpu_custom_call.1} parent=1 // pred_region
      %43 = vsyncadd [#allocation7], 0
      %s44 = sshll.u32 %s3, 4
      %s45 = int_to_ptr.hbm [resolvable:$true] %s44
      %s46 = sshll.u32 [#allocation8], 4
      %s47 = int_to_ptr.vmem [resolvable:$true] %s46
      %52 = dma.hbm_to_vmem [thread:$0]  %s45, 1024, %s47, [#allocation7], 64, 64, 4
    $region17: #{tpu_custom_call.1} parent=1 // pred_fallthru
      _
    // Predicated region
    $region18: #{tpu_custom_call.1} parent=1 // pred_check
      _
    $region19: #{tpu_custom_call.1} parent=1 // pred_check_branch
      %54 = sbr.rel (0) target = $region21
    $region20: #{tpu_custom_call.1} parent=1 // pred_region
      %56 = dma.done [#allocation4], 1024
    $region21: #{tpu_custom_call.1} parent=1 // pred_fallthru
      _
    // Predicated region
    $region22: #{tpu_custom_call.1} parent=1 // pred_check
      _
    $region23: #{tpu_custom_call.1} parent=1 // pred_check_branch
      %58 = sbr.rel (0) target = $region25
    $region24: #{tpu_custom_call.1} parent=1 // pred_region
      %60 = dma.done [#allocation7], 1024
    $region25: #{tpu_custom_call.1} parent=1 // pred_fallthru
      _
    // Predicated region
    $region26: #{tpu_custom_call.1} parent=1 // pred_check
      _
    $region27: #{tpu_custom_call.1} parent=1 // pred_check_branch
      %62 = sbr.rel (0) target = $region29
    $region28: #{tpu_custom_call.1} parent=1 // pred_region
      %64 = dma.done [#allocation7], 1024
    $region29: #{tpu_custom_call.1} parent=1 // pred_fallthru
      _
    %p65 = scmp.eq.s32.totalorder 0, 0
    // Predicated region
    $region30: #{tpu_custom_call.1} parent=1 // pred_check
      %p66 = pneg %p65
    $region31: #{tpu_custom_call.1} parent=1 // pred_check_branch
      %68 = sbr.rel (%p66) target = $region33
    $region32: #{tpu_custom_call.1} parent=1 // pred_region
      %69 = vst [vmem:[#allocation2] sm:$0xff] 0.0
      %70 = vst [vmem:[#allocation2 + $0x8] sm:$0xff] 0.0
      %71 = vst [vmem:[#allocation2 + $0x10] sm:$0xff] 0.0
      %72 = vst [vmem:[#allocation2 + $0x18] sm:$0xff] 0.0
      %73 = vst [vmem:[#allocation2 + $0x20] sm:$0xff] 0.0
      %74 = vst [vmem:[#allocation2 + $0x28] sm:$0xff] 0.0
      %75 = vst [vmem:[#allocation2 + $0x30] sm:$0xff] 0.0
      %76 = vst [vmem:[#allocation2 + $0x38] sm:$0xff] 0.0
      %77 = vst [vmem:[#allocation2 + $0x40] sm:$0xff] 0.0
      %78 = vst [vmem:[#allocation2 + $0x48] sm:$0xff] 0.0
      %79 = vst [vmem:[#allocation2 + $0x50] sm:$0xff] 0.0
      %80 = vst [vmem:[#allocation2 + $0x58] sm:$0xff] 0.0
      %81 = vst [vmem:[#allocation2 + $0x60] sm:$0xff] 0.0
      %82 = vst [vmem:[#allocation2 + $0x68] sm:$0xff] 0.0
      %83 = vst [vmem:[#allocation2 + $0x70] sm:$0xff] 0.0
      %84 = vst [vmem:[#allocation2 + $0x78] sm:$0xff] 0.0
    $region33: #{tpu_custom_call.1} parent=1 // pred_fallthru
      _
    %s85 = smul.u32 0, 128
    %s86 = sshra.s32 %s85, 3
    %s87 = sand.u32 %s85, 7
    %s88 = smul.addr %s86, 4
    %s89 = scalar_lea.vmem [#allocation6], %s88
    %v90 = vld [vmem:[%s89] sm:$0xf]
    %v91 = vld [vmem:[%s89 + $0x4] sm:$0xf]
    %v92 = vld [vmem:[%s89 + $0x8] sm:$0xf]
    %v93 = vld [vmem:[%s89 + $0xc] sm:$0xf]
    %v94 = vld [vmem:[%s89 + $0x10] sm:$0xf]
    %v95 = vld [vmem:[%s89 + $0x14] sm:$0xf]
    %v96 = vld [vmem:[%s89 + $0x18] sm:$0xf]
    %v97 = vld [vmem:[%s89 + $0x1c] sm:$0xf]
    %v98 = vld [vmem:[%s89 + $0x20] sm:$0xf]
    %v99 = vld [vmem:[%s89 + $0x24] sm:$0xf]
    %v100 = vld [vmem:[%s89 + $0x28] sm:$0xf]
    %v101 = vld [vmem:[%s89 + $0x2c] sm:$0xf]
    %v102 = vld [vmem:[%s89 + $0x30] sm:$0xf]
    %v103 = vld [vmem:[%s89 + $0x34] sm:$0xf]
    %v104 = vld [vmem:[%s89 + $0x38] sm:$0xf]
    %v105 = vld [vmem:[%s89 + $0x3c] sm:$0xf]
    %v106 = vld [vmem:[#allocation2] sm:$0xff]
    %v107 = vld [vmem:[#allocation2 + $0x8] sm:$0xff]
    %v108 = vld [vmem:[#allocation2 + $0x10] sm:$0xff]
    %v109 = vld [vmem:[#allocation2 + $0x18] sm:$0xff]
    %v110 = vld [vmem:[#allocation2 + $0x20] sm:$0xff]
    %v111 = vld [vmem:[#allocation2 + $0x28] sm:$0xff]
    %v112 = vld [vmem:[#allocation2 + $0x30] sm:$0xff]
    %v113 = vld [vmem:[#allocation2 + $0x38] sm:$0xff]
    %v114 = vld [vmem:[#allocation2 + $0x40] sm:$0xff]
    %v115 = vld [vmem:[#allocation2 + $0x48] sm:$0xff]
    %v116 = vld [vmem:[#allocation2 + $0x50] sm:$0xff]
    %v117 = vld [vmem:[#allocation2 + $0x58] sm:$0xff]
    %v118 = vld [vmem:[#allocation2 + $0x60] sm:$0xff]
    %v119 = vld [vmem:[#allocation2 + $0x68] sm:$0xff]
    %v120 = vld [vmem:[#allocation2 + $0x70] sm:$0xff]
    %v121 = vld [vmem:[#allocation2 + $0x78] sm:$0xff]
    %v122 = vld [vmem:[#allocation3] sm:$0xf]
    %v123 = vld [vmem:[#allocation3 + $0x4] sm:$0xf]
    %v124 = vld [vmem:[#allocation3 + $0x8] sm:$0xf]
    %v125 = vld [vmem:[#allocation3 + $0xc] sm:$0xf]
    %v126 = vld [vmem:[#allocation3 + $0x10] sm:$0xf]
    %v127 = vld [vmem:[#allocation3 + $0x14] sm:$0xf]
    %v128 = vld [vmem:[#allocation3 + $0x18] sm:$0xf]
    %v129 = vld [vmem:[#allocation3 + $0x1c] sm:$0xf]
    %v130 = vld [vmem:[#allocation3 + $0x20] sm:$0xf]
    %v131 = vld [vmem:[#allocation3 + $0x24] sm:$0xf]
    %v132 = vld [vmem:[#allocation3 + $0x28] sm:$0xf]
    %v133 = vld [vmem:[#allocation3 + $0x2c] sm:$0xf]
    %v134 = vld [vmem:[#allocation3 + $0x30] sm:$0xf]
    %v135 = vld [vmem:[#allocation3 + $0x34] sm:$0xf]
    %v136 = vld [vmem:[#allocation3 + $0x38] sm:$0xf]
    %v137 = vld [vmem:[#allocation3 + $0x3c] sm:$0xf]
    %v154 = vunpack.c.l.b16 %v122
    %v155 = vunpack.c.l.b16 %v123
    %v156 = vunpack.c.l.b16 %v124
    %v157 = vunpack.c.l.b16 %v125
    %v158 = vunpack.c.l.b16 %v126
    %v159 = vunpack.c.l.b16 %v127
    %v160 = vunpack.c.l.b16 %v128
    %v161 = vunpack.c.l.b16 %v129
    %v162 = vunpack.c.l.b16 %v130
    %v163 = vunpack.c.l.b16 %v131
    %v164 = vunpack.c.l.b16 %v132
    %v165 = vunpack.c.l.b16 %v133
    %v166 = vunpack.c.l.b16 %v134
    %v167 = vunpack.c.l.b16 %v135
    %v168 = vunpack.c.l.b16 %v136
    %v169 = vunpack.c.l.b16 %v137
    %v170 = vpack.c.b16 %v155, %v154
    %v171 = vpack.c.b16 %v157, %v156
    %v172 = vpack.c.b16 %v159, %v158
    %v173 = vpack.c.b16 %v161, %v160
    %v174 = vpack.c.b16 %v163, %v162
    %v175 = vpack.c.b16 %v165, %v164
    %v176 = vpack.c.b16 %v167, %v166
    %v177 = vpack.c.b16 %v169, %v168
    %v202 = vunpack.c.l.b16 %v90
    %v203 = vunpack.c.l.b16 %v91
    %v204 = vunpack.c.l.b16 %v92
    %v205 = vunpack.c.l.b16 %v93
    %v206 = vunpack.c.l.b16 %v94
    %v207 = vunpack.c.l.b16 %v95
    %v208 = vunpack.c.l.b16 %v96
    %v209 = vunpack.c.l.b16 %v97
    %v210 = vunpack.c.l.b16 %v98
    %v211 = vunpack.c.l.b16 %v99
    %v212 = vunpack.c.l.b16 %v100
    %v213 = vunpack.c.l.b16 %v101
    %v214 = vunpack.c.l.b16 %v102
    %v215 = vunpack.c.l.b16 %v103
    %v216 = vunpack.c.l.b16 %v104
    %v217 = vunpack.c.l.b16 %v105
    %v218 = vpack.c.b16 %v203, %v202
    %v219 = vpack.c.b16 %v205, %v204
    %v220 = vpack.c.b16 %v207, %v206
    %v221 = vpack.c.b16 %v209, %v208
    %v222 = vpack.c.b16 %v211, %v210
    %v223 = vpack.c.b16 %v213, %v212
    %v224 = vpack.c.b16 %v215, %v214
    %v225 = vpack.c.b16 %v217, %v216
    %234 = vmatpush.bf16.msra.mxu0 %v225
    %235 = vmatpush.bf16.msra.mxu0 %v224
    %236 = vmatpush.bf16.msra.mxu0 %v223
    %237 = vmatpush.bf16.msra.mxu0 %v222
    %238 = vmatpush.bf16.msra.mxu0 %v221
    %239 = vmatpush.bf16.msra.mxu0 %v220
    %240 = vmatpush.bf16.msra.mxu0 %v219
    %241 = vmatpush.bf16.msra.mxu0 %v218
    %242 = vmatmul.bf16.gmra.mxu0 %v170
    %v243 = vpop.f32.mrf.mxu0
    %v244 = vadd.f32 0.0, %v243
    %v245 = vpop.f32.mrf.mxu0
    %v246 = vadd.f32 0.0, %v245
    %247 = vmatmul.bf16.gmra.mxu0 %v171
    %v248 = vpop.f32.mrf.mxu0
    %v249 = vadd.f32 0.0, %v248
    %v250 = vpop.f32.mrf.mxu0
    %v251 = vadd.f32 0.0, %v250
    %252 = vmatmul.bf16.gmra.mxu0 %v172
    %v253 = vpop.f32.mrf.mxu0
    %v254 = vadd.f32 0.0, %v253
    %v255 = vpop.f32.mrf.mxu0
    %v256 = vadd.f32 0.0, %v255
    %257 = vmatmul.bf16.gmra.mxu0 %v173
    %v258 = vpop.f32.mrf.mxu0
    %v259 = vadd.f32 0.0, %v258
    %v260 = vpop.f32.mrf.mxu0
    %v261 = vadd.f32 0.0, %v260
    %262 = vmatmul.bf16.gmra.mxu0 %v174
    %v263 = vpop.f32.mrf.mxu0
    %v264 = vadd.f32 0.0, %v263
    %v265 = vpop.f32.mrf.mxu0
    %v266 = vadd.f32 0.0, %v265
    %267 = vmatmul.bf16.gmra.mxu0 %v175
    %v268 = vpop.f32.mrf.mxu0
    %v269 = vadd.f32 0.0, %v268
    %v270 = vpop.f32.mrf.mxu0
    %v271 = vadd.f32 0.0, %v270
    %272 = vmatmul.bf16.gmra.mxu0 %v176
    %v273 = vpop.f32.mrf.mxu0
    %v274 = vadd.f32 0.0, %v273
    %v275 = vpop.f32.mrf.mxu0
    %v276 = vadd.f32 0.0, %v275
    %277 = vmatmul.bf16.gmra.mxu0 %v177
    %v278 = vpop.f32.mrf.mxu0
    %v279 = vadd.f32 0.0, %v278
    %v280 = vpop.f32.mrf.mxu0
    %v281 = vadd.f32 0.0, %v280
    %282 = vdwg.mxu0
    %v283 = vadd.f32 %v106, %v244
    %v284 = vadd.f32 %v107, %v246
    %v285 = vadd.f32 %v108, %v249
    %v286 = vadd.f32 %v109, %v251
    %v287 = vadd.f32 %v110, %v254
    %v288 = vadd.f32 %v111, %v256
    %v289 = vadd.f32 %v112, %v259
    %v290 = vadd.f32 %v113, %v261
    %v291 = vadd.f32 %v114, %v264
    %v292 = vadd.f32 %v115, %v266
    %v293 = vadd.f32 %v116, %v269
    %v294 = vadd.f32 %v117, %v271
    %v295 = vadd.f32 %v118, %v274
    %v296 = vadd.f32 %v119, %v276
    %v297 = vadd.f32 %v120, %v279
    %v298 = vadd.f32 %v121, %v281
    %299 = vst [vmem:[#allocation2] sm:$0xff] %v283
    %300 = vst [vmem:[#allocation2 + $0x8] sm:$0xff] %v284
    %301 = vst [vmem:[#allocation2 + $0x10] sm:$0xff] %v285
    %302 = vst [vmem:[#allocation2 + $0x18] sm:$0xff] %v286
    %303 = vst [vmem:[#allocation2 + $0x20] sm:$0xff] %v287
    %304 = vst [vmem:[#allocation2 + $0x28] sm:$0xff] %v288
    %305 = vst [vmem:[#allocation2 + $0x30] sm:$0xff] %v289
    %306 = vst [vmem:[#allocation2 + $0x38] sm:$0xff] %v290
    %307 = vst [vmem:[#allocation2 + $0x40] sm:$0xff] %v291
    %308 = vst [vmem:[#allocation2 + $0x48] sm:$0xff] %v292
    %309 = vst [vmem:[#allocation2 + $0x50] sm:$0xff] %v293
    %310 = vst [vmem:[#allocation2 + $0x58] sm:$0xff] %v294
    %311 = vst [vmem:[#allocation2 + $0x60] sm:$0xff] %v295
    %312 = vst [vmem:[#allocation2 + $0x68] sm:$0xff] %v296
    %313 = vst [vmem:[#allocation2 + $0x70] sm:$0xff] %v297
    %314 = vst [vmem:[#allocation2 + $0x78] sm:$0xff] %v298
    // Predicated region
    $region34: #{tpu_custom_call.1} parent=1 // pred_check
      %p315 = pneg %p65
    $region35: #{tpu_custom_call.1} parent=1 // pred_check_branch
      %317 = sbr.rel (%p315) target = $region37
    $region36: #{tpu_custom_call.1} parent=1 // pred_region
      %v318 = vld [vmem:[#allocation2] sm:$0xff]
      %v319 = vld [vmem:[#allocation2 + $0x8] sm:$0xff]
      %v320 = vld [vmem:[#allocation2 + $0x10] sm:$0xff]
      %v321 = vld [vmem:[#allocation2 + $0x18] sm:$0xff]
      %v322 = vld [vmem:[#allocation2 + $0x20] sm:$0xff]
      %v323 = vld [vmem:[#allocation2 + $0x28] sm:$0xff]
      %v324 = vld [vmem:[#allocation2 + $0x30] sm:$0xff]
      %v325 = vld [vmem:[#allocation2 + $0x38] sm:$0xff]
      %v326 = vld [vmem:[#allocation2 + $0x40] sm:$0xff]
      %v327 = vld [vmem:[#allocation2 + $0x48] sm:$0xff]
      %v328 = vld [vmem:[#allocation2 + $0x50] sm:$0xff]
      %v329 = vld [vmem:[#allocation2 + $0x58] sm:$0xff]
      %v330 = vld [vmem:[#allocation2 + $0x60] sm:$0xff]
      %v331 = vld [vmem:[#allocation2 + $0x68] sm:$0xff]
      %v332 = vld [vmem:[#allocation2 + $0x70] sm:$0xff]
      %v333 = vld [vmem:[#allocation2 + $0x78] sm:$0xff]
      %v334 = vld [vmem:[%s2] sm:$0x1]
      %v336 = vperm.slane %v334, 0
      %v338 = vadd.f32 %v318, %v336
      %v339 = vadd.f32 %v319, %v336
      %v340 = vadd.f32 %v320, %v336
      %v341 = vadd.f32 %v321, %v336
      %v342 = vadd.f32 %v322, %v336
      %v343 = vadd.f32 %v323, %v336
      %v344 = vadd.f32 %v324, %v336
      %v345 = vadd.f32 %v325, %v336
      %v346 = vadd.f32 %v326, %v336
      %v347 = vadd.f32 %v327, %v336
      %v348 = vadd.f32 %v328, %v336
      %v349 = vadd.f32 %v329, %v336
      %v350 = vadd.f32 %v330, %v336
      %v351 = vadd.f32 %v331, %v336
      %v352 = vadd.f32 %v332, %v336
      %v353 = vadd.f32 %v333, %v336
      %v354 = vmax.f32 %v338, 0.0
      %v355 = vmax.f32 %v339, 0.0
      %v356 = vmax.f32 %v340, 0.0
      %v357 = vmax.f32 %v341, 0.0
      %v358 = vmax.f32 %v342, 0.0
      %v359 = vmax.f32 %v343, 0.0
      %v360 = vmax.f32 %v344, 0.0
      %v361 = vmax.f32 %v345, 0.0
      %v362 = vmax.f32 %v346, 0.0
      %v363 = vmax.f32 %v347, 0.0
      %v364 = vmax.f32 %v348, 0.0
      %v365 = vmax.f32 %v349, 0.0
      %v366 = vmax.f32 %v350, 0.0
      %v367 = vmax.f32 %v351, 0.0
      %v368 = vmax.f32 %v352, 0.0
      %v369 = vmax.f32 %v353, 0.0
      %v370 = vpack.c.bf16 %v355, %v354
      %v371 = vpack.c.bf16 %v357, %v356
      %v372 = vpack.c.bf16 %v359, %v358
      %v373 = vpack.c.bf16 %v361, %v360
      %v374 = vpack.c.bf16 %v363, %v362
      %v375 = vpack.c.bf16 %v365, %v364
      %v376 = vpack.c.bf16 %v367, %v366
      %v377 = vpack.c.bf16 %v369, %v368
      %v378 = vld [vmem:[#allocation8] sm:$0xf]
      %v379 = vld [vmem:[#allocation8 + $0x4] sm:$0xf]
      %v380 = vld [vmem:[#allocation8 + $0x8] sm:$0xf]
      %v381 = vld [vmem:[#allocation8 + $0xc] sm:$0xf]
      %v382 = vld [vmem:[#allocation8 + $0x10] sm:$0xf]
      %v383 = vld [vmem:[#allocation8 + $0x14] sm:$0xf]
      %v384 = vld [vmem:[#allocation8 + $0x18] sm:$0xf]
      %v385 = vld [vmem:[#allocation8 + $0x1c] sm:$0xf]
      %v386 = vld [vmem:[#allocation8 + $0x20] sm:$0xf]
      %v387 = vld [vmem:[#allocation8 + $0x24] sm:$0xf]
      %v388 = vld [vmem:[#allocation8 + $0x28] sm:$0xf]
      %v389 = vld [vmem:[#allocation8 + $0x2c] sm:$0xf]
      %v390 = vld [vmem:[#allocation8 + $0x30] sm:$0xf]
      %v391 = vld [vmem:[#allocation8 + $0x34] sm:$0xf]
      %v392 = vld [vmem:[#allocation8 + $0x38] sm:$0xf]
      %v393 = vld [vmem:[#allocation8 + $0x3c] sm:$0xf]
      %v410 = vunpack.c.l.b16 %v378
      %v411 = vunpack.c.l.b16 %v379
      %v412 = vunpack.c.l.b16 %v380
      %v413 = vunpack.c.l.b16 %v381
      %v414 = vunpack.c.l.b16 %v382
      %v415 = vunpack.c.l.b16 %v383
      %v416 = vunpack.c.l.b16 %v384
      %v417 = vunpack.c.l.b16 %v385
      %v418 = vunpack.c.l.b16 %v386
      %v419 = vunpack.c.l.b16 %v387
      %v420 = vunpack.c.l.b16 %v388
      %v421 = vunpack.c.l.b16 %v389
      %v422 = vunpack.c.l.b16 %v390
      %v423 = vunpack.c.l.b16 %v391
      %v424 = vunpack.c.l.b16 %v392
      %v425 = vunpack.c.l.b16 %v393
      %v426 = vpack.c.b16 %v411, %v410
      %v427 = vpack.c.b16 %v413, %v412
      %v428 = vpack.c.b16 %v415, %v414
      %v429 = vpack.c.b16 %v417, %v416
      %v430 = vpack.c.b16 %v419, %v418
      %v431 = vpack.c.b16 %v421, %v420
      %v432 = vpack.c.b16 %v423, %v422
      %v433 = vpack.c.b16 %v425, %v424
      %442 = vmatpush.bf16.msra.mxu0 %v433
      %443 = vmatpush.bf16.msra.mxu0 %v432
      %444 = vmatpush.bf16.msra.mxu0 %v431
      %445 = vmatpush.bf16.msra.mxu0 %v430
      %446 = vmatpush.bf16.msra.mxu0 %v429
      %447 = vmatpush.bf16.msra.mxu0 %v428
      %448 = vmatpush.bf16.msra.mxu0 %v427
      %449 = vmatpush.bf16.msra.mxu0 %v426
      %450 = vmatmul.bf16.gmra.mxu0 %v370
      %v451 = vpop.f32.mrf.mxu0
      %v452 = vadd.f32 0.0, %v451
      %v453 = vpop.f32.mrf.mxu0
      %v454 = vadd.f32 0.0, %v453
      %455 = vmatmul.bf16.gmra.mxu0 %v371
      %v456 = vpop.f32.mrf.mxu0
      %v457 = vadd.f32 0.0, %v456
      %v458 = vpop.f32.mrf.mxu0
      %v459 = vadd.f32 0.0, %v458
      %460 = vmatmul.bf16.gmra.mxu0 %v372
      %v461 = vpop.f32.mrf.mxu0
      %v462 = vadd.f32 0.0, %v461
      %v463 = vpop.f32.mrf.mxu0
      %v464 = vadd.f32 0.0, %v463
      %465 = vmatmul.bf16.gmra.mxu0 %v373
      %v466 = vpop.f32.mrf.mxu0
      %v467 = vadd.f32 0.0, %v466
      %v468 = vpop.f32.mrf.mxu0
      %v469 = vadd.f32 0.0, %v468
      %470 = vmatmul.bf16.gmra.mxu0 %v374
      %v471 = vpop.f32.mrf.mxu0
      %v472 = vadd.f32 0.0, %v471
      %v473 = vpop.f32.mrf.mxu0
      %v474 = vadd.f32 0.0, %v473
      %475 = vmatmul.bf16.gmra.mxu0 %v375
      %v476 = vpop.f32.mrf.mxu0
      %v477 = vadd.f32 0.0, %v476
      %v478 = vpop.f32.mrf.mxu0
      %v479 = vadd.f32 0.0, %v478
      %480 = vmatmul.bf16.gmra.mxu0 %v376
      %v481 = vpop.f32.mrf.mxu0
      %v482 = vadd.f32 0.0, %v481
      %v483 = vpop.f32.mrf.mxu0
      %v484 = vadd.f32 0.0, %v483
      %485 = vmatmul.bf16.gmra.mxu0 %v377
      %v486 = vpop.f32.mrf.mxu0
      %v487 = vadd.f32 0.0, %v486
      %v488 = vpop.f32.mrf.mxu0
      %v489 = vadd.f32 0.0, %v488
      %490 = vdwg.mxu0
      %v491 = vpack.c.bf16 %v452, %v452
      %v492 = vpack.c.bf16 %v454, %v454
      %v493 = vpack.c.bf16 %v457, %v457
      %v494 = vpack.c.bf16 %v459, %v459
      %v495 = vpack.c.bf16 %v462, %v462
      %v496 = vpack.c.bf16 %v464, %v464
      %v497 = vpack.c.bf16 %v467, %v467
      %v498 = vpack.c.bf16 %v469, %v469
      %v499 = vpack.c.bf16 %v472, %v472
      %v500 = vpack.c.bf16 %v474, %v474
      %v501 = vpack.c.bf16 %v477, %v477
      %v502 = vpack.c.bf16 %v479, %v479
      %v503 = vpack.c.bf16 %v482, %v482
      %v504 = vpack.c.bf16 %v484, %v484
      %v505 = vpack.c.bf16 %v487, %v487
      %v506 = vpack.c.bf16 %v489, %v489
      %507 = vst [vmem:[#allocation9] sm:$0xf] %v491
      %508 = vst [vmem:[#allocation9 + $0x4] sm:$0xf] %v492
      %509 = vst [vmem:[#allocation9 + $0x8] sm:$0xf] %v493
      %510 = vst [vmem:[#allocation9 + $0xc] sm:$0xf] %v494
      %511 = vst [vmem:[#allocation9 + $0x10] sm:$0xf] %v495
      %512 = vst [vmem:[#allocation9 + $0x14] sm:$0xf] %v496
      %513 = vst [vmem:[#allocation9 + $0x18] sm:$0xf] %v497
      %514 = vst [vmem:[#allocation9 + $0x1c] sm:$0xf] %v498
      %515 = vst [vmem:[#allocation9 + $0x20] sm:$0xf] %v499
      %516 = vst [vmem:[#allocation9 + $0x24] sm:$0xf] %v500
      %517 = vst [vmem:[#allocation9 + $0x28] sm:$0xf] %v501
      %518 = vst [vmem:[#allocation9 + $0x2c] sm:$0xf] %v502
      %519 = vst [vmem:[#allocation9 + $0x30] sm:$0xf] %v503
      %520 = vst [vmem:[#allocation9 + $0x34] sm:$0xf] %v504
      %521 = vst [vmem:[#allocation9 + $0x38] sm:$0xf] %v505
      %522 = vst [vmem:[#allocation9 + $0x3c] sm:$0xf] %v506
    $region37: #{tpu_custom_call.1} parent=1 // pred_fallthru
      _
    // Predicated region
    $region38: #{tpu_custom_call.1} parent=1 // pred_check
      _
    $region39: #{tpu_custom_call.1} parent=1 // pred_check_branch
      %524 = sbr.rel (0) target = $region41
    $region40: #{tpu_custom_call.1} parent=1 // pred_region
      %526 = vsyncadd [#allocation5], 0
      %s527 = sshll.u32 [#allocation9], 4
      %s528 = int_to_ptr.vmem [resolvable:$true] %s527
      %s529 = sshll.u32 %s4, 4
      %s530 = int_to_ptr.hbm [resolvable:$true] %s529
      %535 = dma.vmem_to_hbm [thread:$0]  %s528, 1024, %s530, [#allocation5], 64, 64, 4
    $region41: #{tpu_custom_call.1} parent=1 // pred_fallthru
      _
    // Predicated region
    $region42: #{tpu_custom_call.1} parent=1 // pred_check
      _
    $region43: #{tpu_custom_call.1} parent=1 // pred_check_branch
      %537 = sbr.rel (0) target = $region45
    $region44: #{tpu_custom_call.1} parent=1 // pred_region
      %539 = dma.done [#allocation5], 1024
    $region45: #{tpu_custom_call.1} parent=1 // pred_fallthru
      _
    %540 = vsyncpa [#allocation4], 1
    %541 = vsyncpa [#allocation7], 1
    %542 = vsyncpa [#allocation5], 1

</llo_original>
